<compile_context>
chip_gen: v6e
topology: v6e:2x2x1
jax: 0.10.0
libtpu: 0.0.40
codegen_flags: <defaults>
</compile_context>

<pallas_src>
import functools
from typing import NamedTuple

import jax
import jax.numpy as jnp
from jax import lax
from jax.experimental import pallas as pl
from jax.experimental.pallas import tpu as pltpu


def _round_up(x, m):
    return ((x + m - 1) // m) * m


class MemoryBank(NamedTuple):
    """Preprocessed MemoryUnit parameters (built once, reused every forward)."""
    arr2: jax.Array   # (k_pad, e_pad) f32: [:, :E] = -2*A, [:, E] = ||A_k||^2, rest 0
    mask: jax.Array   # (1, k_pad) f32: 1 for real memory rows, 0 for padding
    k: int
    e: int
    k_pad: int
    e_pad: int


def prepare_memory_bank(array):
    """Pad + preprocess the (K, E) memory bank.  Call once at parameter creation."""
    K, E = array.shape
    e_pad = _round_up(E + 1, 128)          # +1 lane carries ||A_k||^2
    k_pad = _round_up(K, 8)
    a = array.astype(jnp.float32)
    arr2 = jnp.zeros((k_pad, e_pad), jnp.float32)
    arr2 = arr2.at[:K, :E].set(-2.0 * a)
    arr2 = arr2.at[:K, E].set(jnp.sum(a * a, axis=1))
    mask = jnp.zeros((1, k_pad), jnp.float32).at[0, :K].set(1.0)
    return MemoryBank(arr2=arr2, mask=mask, k=K, e=E, k_pad=k_pad, e_pad=e_pad)


def memory_unit_kernel(task_ref, arr2_ref, mask_ref, out_ref, *, temperature):
    # task_ref: (Bt, Ep)  rows = [ t | 1.0 | 0 ... ]           (ones lane at col E)
    # arr2_ref: (Kp, Ep)  rows = [ -2*A_k | ||A_k||^2 | 0 ... ] (padded rows all 0)
    # mask_ref: (1, Kp)   1 for real memory rows, 0 for padded rows
    task = task_ref[...]
    arr2 = arr2_ref[...]
    mask = mask_ref[...]

    # ONE MXU pass gives -2 t.A_k + ||A_k||^2 (the norm rides the padded lane).
    dots2 = lax.dot_general(task, arr2, (((1,), (1,)), ((), ())),
                            preferred_element_type=jnp.float32)       # (Bt, Kp)

    # ||t||^2; the ones lane contributes exactly 1.0, remove it.
    t_sq = jnp.sum(task * task, axis=1, keepdims=True) - 1.0          # (Bt, 1)

    sq_dist = jnp.maximum(t_sq + dots2, 0.0)                          # (Bt, Kp)
    dist = jnp.sqrt(sq_dist)

    if temperature == 1.0:
        # exponent == -1: one exact reciprocal, no log/exp.
        res = 1.0 / (1.0 + dist)
    else:
        exponent = -(temperature + 1.0) / 2.0
        res = jnp.exp(exponent * jnp.log(dist / temperature + 1.0))

    res = res * mask                               # zero out padded memory rows
    denom = jnp.sum(res, axis=1, keepdims=True)                       # (Bt, 1)

    # value = (res / denom) @ A == (res @ (-2*A)) * (-0.5 / denom)
    # (-2 and -0.5 are powers of two -> exact).  Column E holds garbage from the
    # norm lane; the caller slices it off.
    w = jnp.dot(res, arr2, preferred_element_type=jnp.float32)        # (Bt, Ep)
    out_ref[...] = w * (-0.5 * pl.reciprocal(denom, approx=False))


def _choose_block_b(b_req, k_pad):
    """Adaptive batch tile: fill the MXU M dimension, but keep (Bt, Kp)
    temporaries within ~64K f32 elements and keep >= 2 grid steps when there is
    more than one minimal tile of work (both v7x TensorCores stay busy)."""
    cap = max(8, min(256, (65536 // max(k_pad, 8)) // 8 * 8))
    block = min(b_req, cap)
    if b_req > 8:
        block = min(block, _round_up((b_req + 1) // 2, 8))
    return max(block, 8)


def _resident_spec(shape, buffered):
    """Constant-index (grid-resident) block; single-buffer it when supported."""
    index_map = lambda b: (0,) * len(shape)
    if buffered:
        try:
            return pl.BlockSpec(shape, index_map, pipeline_mode=pl.Buffered(1))
        except Exception:   # older jax: no pipeline_mode / Buffered
            pass
    return pl.BlockSpec(shape, index_map)


def memory_unit_forward_padded(task_p, bank, temperature, *, block_b):
    """task_p: (b_pad, e_pad) f32, already padded with the ones lane at col E."""
    b_pad, e_pad = task_p.shape
    assert e_pad == bank.e_pad and b_pad % block_b == 0

    kernel = functools.partial(memory_unit_kernel, temperature=float(temperature))

    # VMEM estimate: double-buffered task/out tiles + single-buffered bank/mask.
    est_bytes = 4 * (2 * 2 * block_b * e_pad + bank.k_pad * e_pad + bank.k_pad)
    params = dict(dimension_semantics=("parallel",))
    if est_bytes > (12 << 20):
        # Raise the scoped-VMEM limit (v5e default is the smallest of the three);
        # cap at v7x's 64 MiB per-core physical VMEM.
        params["vmem_limit_bytes"] = int(min(2 * est_bytes, 64 << 20))

    def _call(use_buffered):
        return pl.pallas_call(
            kernel,
            out_shape=jax.ShapeDtypeStruct((b_pad, e_pad), jnp.float32),
            grid=(b_pad // block_b,),
            in_specs=[
                pl.BlockSpec((block_b, e_pad), lambda b: (b, 0)),    # task tile
                _resident_spec((bank.k_pad, e_pad), use_buffered),   # memory bank
                _resident_spec((1, bank.k_pad), use_buffered),       # row mask
            ],
            out_specs=pl.BlockSpec((block_b, e_pad), lambda b: (b, 0)),
            compiler_params=pltpu.CompilerParams(**params),
        )(task_p, bank.arr2, bank.mask)

    try:
        return _call(True)
    except Exception:
        # Fallback: identical kernel with default (double) buffering.
        return _call(False)


def memory_unit_forward_batched(task_embeds, bank, temperature, *, block_b=None):
    """Convenience wrapper: (B, E) tasks -> (B, E) values.  Hot paths should stay
    on the padded layout and call memory_unit_forward_padded directly."""
    B, E = task_embeds.shape
    assert E == bank.e
    if block_b is None:
        block_b = _choose_block_b(_round_up(B, 8), bank.k_pad)
    b_pad = _round_up(B, block_b)
    task_p = jnp.zeros((b_pad, bank.e_pad), jnp.float32)
    task_p = task_p.at[:B, :E].set(task_embeds.astype(jnp.float32))
    task_p = task_p.at[:B, E].set(1.0)            # ones lane picks up ||A_k||^2
    out = memory_unit_forward_padded(task_p, bank, temperature, block_b=block_b)
    return out[:B, :E]


def memory_unit_forward(task_embed, bank, temperature):
    """Original module semantics: task_embed (1, E) -> value (E,)."""
    return memory_unit_forward_batched(task_embed.reshape(1, -1), bank,
                                       temperature).reshape(-1)


# ----------------------------- reference & demo -----------------------------

def _reference(task_embed, array, temperature):
    diff = task_embed - array
    dist = jnp.sqrt(jnp.sum(diff * diff, axis=1, keepdims=True))
    res = jnp.power(dist / temperature + 1.0, -(temperature + 1.0) / 2.0)
    c = (res / jnp.sum(res)).T
    return (c @ array).reshape(-1)


def xavier_uniform(key, shape, dtype=jnp.float32):
    # Matches torch.nn.init.xavier_uniform_ for a 2D (fan_out, fan_in) tensor.
    fan_out, fan_in = shape
    bound = (6.0 / (fan_in + fan_out)) ** 0.5
    return jax.random.uniform(key, shape, dtype=dtype, minval=-bound, maxval=bound)


if __name__ == "__main__":
    clusters_k = 8
    emb_size = 32

    key = jax.random.PRNGKey(0)
    k_arr, k_task, k_batch = jax.random.split(key, 3)

    array = xavier_uniform(k_arr, (clusters_k, emb_size))   # the nn.Parameter
    bank = prepare_memory_bank(array)                       # once, not per call
    task_embed = jax.random.normal(k_task, (1, emb_size), jnp.float32)

    # Single-task forward, T = 1 (reciprocal fast path).
    value = jax.block_until_ready(memory_unit_forward(task_embed, bank, 1.0))
    ref = _reference(task_embed, array, 1.0)
    assert value.shape == (emb_size,)
    assert jnp.allclose(value, ref, atol=1e-5, rtol=1e-5), "mismatch (T=1)"

    # Single-task forward, T = 2 (general log/exp path).
    value2 = jax.block_until_ready(memory_unit_forward(task_embed, bank, 2.0))
    ref2 = _reference(task_embed, array, 2.0)
    assert jnp.allclose(value2, ref2, atol=1e-5, rtol=1e-5), "mismatch (T=2)"

    # Batched evaluation: many MemoryUnit forwards in one pallas_call (2 grid
    # steps here, exercising the multi-step / parallel path).
    batch = 16
    tasks = jax.random.normal(k_batch, (batch, emb_size), jnp.float32)
    values = jax.block_until_ready(memory_unit_forward_batched(tasks, bank, 1.0))
    ref_b = jax.vmap(lambda t: _reference(t[None, :], array, 1.0))(tasks)
    assert values.shape == (batch, emb_size)
    assert jnp.allclose(values, ref_b, atol=1e-5, rtol=1e-5), "mismatch (batched)"

    print("KERNEL_OK")
</pallas_src>

<mosaic_0001>
module attributes {stable_mosaic.version = 11 : i64} {
  func.func @memory_unit_kernel(%arg0: i32, %arg1: memref<8x128xf32, #tpu.memory_space<vmem>>, %arg2: memref<8x128xf32, #tpu.memory_space<vmem>>, %arg3: memref<1x8xf32, #tpu.memory_space<vmem>>, %arg4: memref<8x128xf32, #tpu.memory_space<vmem>>) attributes {dimension_semantics = [#tpu.dimension_semantics<parallel>], iteration_bounds = array<i64: 1>, scalar_prefetch = 0 : i64, scratch_operands = 0 : i64, tpu.core_type = #tpu.core_type<tc>, window_params = [{transform_indices = @transform_0, window_bounds = array<i64: 8, 128>}, {pipeline_mode = #tpu.pipeline_mode<synchronous>, transform_indices = @transform_1, window_bounds = array<i64: 8, 128>}, {pipeline_mode = #tpu.pipeline_mode<synchronous>, transform_indices = @transform_2, window_bounds = array<i64: 1, 8>}, {transform_indices = @transform_3, window_bounds = array<i64: 8, 128>}]} {
    %c0 = arith.constant 0 : index
    %c0_0 = arith.constant 0 : index
    %0 = vector.load %arg1[%c0, %c0_0] : memref<8x128xf32, #tpu.memory_space<vmem>>, vector<8x128xf32>
    %c0_1 = arith.constant 0 : index
    %c0_2 = arith.constant 0 : index
    %1 = vector.load %arg2[%c0_1, %c0_2] : memref<8x128xf32, #tpu.memory_space<vmem>>, vector<8x128xf32>
    %c0_3 = arith.constant 0 : index
    %c0_4 = arith.constant 0 : index
    %2 = vector.load %arg3[%c0_3, %c0_4] : memref<1x8xf32, #tpu.memory_space<vmem>>, vector<1x8xf32>
    %cst = arith.constant dense<0.000000e+00> : vector<8x8xf32>
    %3 = tpu.matmul %0, %1, %cst {dimension_numbers = #tpu.dot_dimension_numbers<[1], [1], [0], [0], [0, 0, 1, 0], [], []>} : vector<8x128xf32>, vector<8x128xf32>, vector<8x8xf32> -> vector<8x8xf32>
    %4 = arith.mulf %0, %0 : vector<8x128xf32>
    %cst_5 = arith.constant dense<0.000000e+00> : vector<8xf32>
    %5 = vector.multi_reduction <add>, %4, %cst_5 [1] : vector<8x128xf32> to vector<8xf32>
    %6 = vector.shape_cast %5 : vector<8xf32> to vector<8x1xf32>
    %cst_6 = arith.constant 1.000000e+00 : f32
    %7 = vector.broadcast %cst_6 : f32 to vector<8x1xf32>
    %8 = arith.subf %6, %7 : vector<8x1xf32>
    %9 = vector.broadcast %8 : vector<8x1xf32> to vector<8x8xf32>
    %10 = arith.addf %9, %3 : vector<8x8xf32>
    %cst_7 = arith.constant 0.000000e+00 : f32
    %11 = vector.broadcast %cst_7 : f32 to vector<8x8xf32>
    %12 = arith.maximumf %10, %11 : vector<8x8xf32>
    %13 = math.sqrt %12 : vector<8x8xf32>
    %cst_8 = arith.constant 1.000000e+00 : f32
    %14 = vector.broadcast %cst_8 : f32 to vector<8x8xf32>
    %15 = arith.addf %14, %13 : vector<8x8xf32>
    %cst_9 = arith.constant 1.000000e+00 : f32
    %16 = vector.broadcast %cst_9 : f32 to vector<8x8xf32>
    %17 = arith.divf %16, %15 : vector<8x8xf32>
    %18 = vector.broadcast %2 : vector<1x8xf32> to vector<8x8xf32>
    %19 = arith.mulf %17, %18 : vector<8x8xf32>
    %cst_10 = arith.constant dense<0.000000e+00> : vector<8xf32>
    %20 = vector.multi_reduction <add>, %19, %cst_10 [1] : vector<8x8xf32> to vector<8xf32>
    %21 = vector.shape_cast %20 : vector<8xf32> to vector<8x1xf32>
    %cst_11 = arith.constant dense<0.000000e+00> : vector<8x128xf32>
    %22 = tpu.matmul %19, %1, %cst_11 {dimension_numbers = #tpu.dot_dimension_numbers<[1], [0], [0], [1], [0, 0, 1, 1], [], []>} : vector<8x8xf32>, vector<8x128xf32>, vector<8x128xf32> -> vector<8x128xf32>
    %23 = tpu.reciprocal %21 : vector<8x1xf32> -> vector<8x1xf32>
    %cst_12 = arith.constant -5.000000e-01 : f32
    %24 = vector.broadcast %cst_12 : f32 to vector<8x1xf32>
    %25 = arith.mulf %24, %23 : vector<8x1xf32>
    %26 = vector.broadcast %25 : vector<8x1xf32> to vector<8x128xf32>
    %27 = arith.mulf %22, %26 : vector<8x128xf32>
    %c0_13 = arith.constant 0 : index
    %c0_14 = arith.constant 0 : index
    %28 = vector.load %arg4[%c0_13, %c0_14] : memref<8x128xf32, #tpu.memory_space<vmem>>, vector<8x128xf32>
    tpu.vector_store %arg4[%c0_13, %c0_14], %27 {strides = array<i32>} : memref<8x128xf32, #tpu.memory_space<vmem>>, vector<8x128xf32>,
    return
  }
  func.func @transform_0(%arg0: i32) -> (i32, i32) {
    %c0_i32 = arith.constant 0 : i32
    %c0_i32_0 = arith.constant 0 : i32
    return %arg0, %c0_i32 : i32, i32
  }
  func.func @transform_1(%arg0: i32) -> (i32, i32) {
    %c0_i32 = arith.constant 0 : i32
    %c0_i32_0 = arith.constant 0 : i32
    %c0_i32_1 = arith.constant 0 : i32
    return %c0_i32, %c0_i32_0 : i32, i32
  }
  func.func @transform_2(%arg0: i32) -> (i32, i32) {
    %c0_i32 = arith.constant 0 : i32
    %c0_i32_0 = arith.constant 0 : i32
    %c0_i32_1 = arith.constant 0 : i32
    return %c0_i32, %c0_i32_0 : i32, i32
  }
  func.func @transform_3(%arg0: i32) -> (i32, i32) {
    %c0_i32 = arith.constant 0 : i32
    %c0_i32_0 = arith.constant 0 : i32
    return %arg0, %c0_i32 : i32, i32
  }
}

module attributes {stable_mosaic.version = 11 : i64} {
  func.func @memory_unit_kernel(%arg0: i32, %arg1: memref<8x128xf32, #tpu.memory_space<vmem>>, %arg2: memref<8x128xf32, #tpu.memory_space<vmem>>, %arg3: memref<1x8xf32, #tpu.memory_space<vmem>>, %arg4: memref<8x128xf32, #tpu.memory_space<vmem>>) attributes {dimension_semantics = [#tpu.dimension_semantics<parallel>], iteration_bounds = array<i64: 1>, scalar_prefetch = 0 : i64, scratch_operands = 0 : i64, tpu.core_type = #tpu.core_type<tc>, window_params = [{transform_indices = @transform_0, window_bounds = array<i64: 8, 128>}, {pipeline_mode = #tpu.pipeline_mode<synchronous>, transform_indices = @transform_1, window_bounds = array<i64: 8, 128>}, {pipeline_mode = #tpu.pipeline_mode<synchronous>, transform_indices = @transform_2, window_bounds = array<i64: 1, 8>}, {transform_indices = @transform_3, window_bounds = array<i64: 8, 128>}]} {
    %c0 = arith.constant 0 : index
    %c0_0 = arith.constant 0 : index
    %0 = vector.load %arg1[%c0, %c0_0] : memref<8x128xf32, #tpu.memory_space<vmem>>, vector<8x128xf32>
    %c0_1 = arith.constant 0 : index
    %c0_2 = arith.constant 0 : index
    %1 = vector.load %arg2[%c0_1, %c0_2] : memref<8x128xf32, #tpu.memory_space<vmem>>, vector<8x128xf32>
    %c0_3 = arith.constant 0 : index
    %c0_4 = arith.constant 0 : index
    %2 = vector.load %arg3[%c0_3, %c0_4] : memref<1x8xf32, #tpu.memory_space<vmem>>, vector<1x8xf32>
    %cst = arith.constant dense<0.000000e+00> : vector<8x8xf32>
    %3 = tpu.matmul %0, %1, %cst {dimension_numbers = #tpu.dot_dimension_numbers<[1], [1], [0], [0], [0, 0, 1, 0], [], []>} : vector<8x128xf32>, vector<8x128xf32>, vector<8x8xf32> -> vector<8x8xf32>
    %4 = arith.mulf %0, %0 : vector<8x128xf32>
    %cst_5 = arith.constant dense<0.000000e+00> : vector<8xf32>
    %5 = vector.multi_reduction <add>, %4, %cst_5 [1] : vector<8x128xf32> to vector<8xf32>
    %6 = vector.shape_cast %5 : vector<8xf32> to vector<8x1xf32>
    %cst_6 = arith.constant 1.000000e+00 : f32
    %7 = vector.broadcast %cst_6 : f32 to vector<8x1xf32>
    %8 = arith.subf %6, %7 : vector<8x1xf32>
    %9 = vector.broadcast %8 : vector<8x1xf32> to vector<8x8xf32>
    %10 = arith.addf %9, %3 : vector<8x8xf32>
    %cst_7 = arith.constant 0.000000e+00 : f32
    %11 = vector.broadcast %cst_7 : f32 to vector<8x8xf32>
    %12 = arith.maximumf %10, %11 : vector<8x8xf32>
    %13 = math.sqrt %12 : vector<8x8xf32>
    %cst_8 = arith.constant 1.000000e+00 : f32
    %14 = vector.broadcast %cst_8 : f32 to vector<8x8xf32>
    %15 = arith.addf %14, %13 : vector<8x8xf32>
    %cst_9 = arith.constant 1.000000e+00 : f32
    %16 = vector.broadcast %cst_9 : f32 to vector<8x8xf32>
    %17 = arith.divf %16, %15 : vector<8x8xf32>
    %18 = vector.broadcast %2 : vector<1x8xf32> to vector<8x8xf32>
    %19 = arith.mulf %17, %18 : vector<8x8xf32>
    %cst_10 = arith.constant dense<0.000000e+00> : vector<8xf32>
    %20 = vector.multi_reduction <add>, %19, %cst_10 [1] : vector<8x8xf32> to vector<8xf32>
    %21 = vector.shape_cast %20 : vector<8xf32> to vector<8x1xf32>
    %cst_11 = arith.constant dense<0.000000e+00> : vector<8x128xf32>
    %22 = tpu.matmul %19, %1, %cst_11 {dimension_numbers = #tpu.dot_dimension_numbers<[1], [0], [0], [1], [0, 0, 1, 1], [], []>} : vector<8x8xf32>, vector<8x128xf32>, vector<8x128xf32> -> vector<8x128xf32>
    %23 = tpu.reciprocal %21 : vector<8x1xf32> -> vector<8x1xf32>
    %cst_12 = arith.constant -5.000000e-01 : f32
    %24 = vector.broadcast %cst_12 : f32 to vector<8x1xf32>
    %25 = arith.mulf %24, %23 : vector<8x1xf32>
    %26 = vector.broadcast %25 : vector<8x1xf32> to vector<8x128xf32>
    %27 = arith.mulf %22, %26 : vector<8x128xf32>
    %c0_13 = arith.constant 0 : index
    %c0_14 = arith.constant 0 : index
    %28 = vector.load %arg4[%c0_13, %c0_14] : memref<8x128xf32, #tpu.memory_space<vmem>>, vector<8x128xf32>
    tpu.vector_store %arg4[%c0_13, %c0_14], %27 {strides = array<i32>} : memref<8x128xf32, #tpu.memory_space<vmem>>, vector<8x128xf32>,
    return
  }
  func.func @transform_0(%arg0: i32) -> (i32, i32) {
    %c0_i32 = arith.constant 0 : i32
    %c0_i32_0 = arith.constant 0 : i32
    return %arg0, %c0_i32 : i32, i32
  }
  func.func @transform_1(%arg0: i32) -> (i32, i32) {
    %c0_i32 = arith.constant 0 : i32
    %c0_i32_0 = arith.constant 0 : i32
    %c0_i32_1 = arith.constant 0 : i32
    return %c0_i32, %c0_i32_0 : i32, i32
  }
  func.func @transform_2(%arg0: i32) -> (i32, i32) {
    %c0_i32 = arith.constant 0 : i32
    %c0_i32_0 = arith.constant 0 : i32
    %c0_i32_1 = arith.constant 0 : i32
    return %c0_i32, %c0_i32_0 : i32, i32
  }
  func.func @transform_3(%arg0: i32) -> (i32, i32) {
    %c0_i32 = arith.constant 0 : i32
    %c0_i32_0 = arith.constant 0 : i32
    return %arg0, %c0_i32 : i32, i32
  }
}

</mosaic_0001>

<llo_original>
// kernel: tpu_custom_call.1
$region0: #{tpu_custom_call.1}
  #allocation0 [shape = 'u32[]', space=smem, size = 0x4, offset = 0x4, fixed_abs, tag = 'smem constant byte address 0x4 - core index']
  #allocation1 [shape = 'u32[144,128]{1,0:T(1,128)}', space=vmem, size = 0x12000, scoped, tag = 'internal scratch']
  %s0 = inlined_call_operand.hbm [shape: f32[8,128], index: 0, kind: input, shape index: {}]
  %s1 = inlined_call_operand.hbm [shape: f32[8,128], index: 1, kind: input, shape index: {}]
  %s2 = inlined_call_operand.vmem [shape: f32[1,8], index: 2, kind: input, shape index: {}]
  %s3 = inlined_call_operand.hbm [shape: f32[8,128], index: 3, kind: output, shape index: {}]
  %s4 = sld [smem:[#allocation0]]
  $region30: #{tpu_custom_call.1} parent=0
    _
  %s6 = ssub.s32 1, %s4
  %s7 = scalar_select 0, %s6, %s4
  $region1: #{tpu_custom_call.1} parent=0
    #allocation2 [shape = 'u8[4096]{0}', space=vmem, size = 0x1000, scoped, tag = 'input window, operand 0, single buffered']
    #allocation3 [shape = 's32[1]{0}', space=sflag, size = 0x4, scoped, tag = 'scoped memory for tpu_custom_call.1']
    #allocation4 [shape = 's32[1]{0}', space=sflag, size = 0x4, scoped, tag = 'scoped memory for tpu_custom_call.1']
    #allocation5 [shape = 'u8[4096]{0}', space=vmem, size = 0x1000, scoped, tag = 'input window, operand 1, single buffered']
    #allocation6 [shape = 's32[1]{0}', space=sflag, size = 0x4, scoped, tag = 'scoped memory for tpu_custom_call.1']
    #allocation7 [shape = 'u8[4096]{0}', space=vmem, size = 0x1000, scoped, tag = 'output window, operand 0, single buffered']
    %8 = vsyncpa [#allocation3], 0
    %9 = vsyncpa [#allocation6], 0
    %10 = vsyncpa [#allocation4], 0
    // Predicated region
    $region2: #{tpu_custom_call.1} parent=1 // pred_check
      _
    $region3: #{tpu_custom_call.1} parent=1 // pred_check_branch
      %12 = sbr.rel (0) target = $region5
    $region4: #{tpu_custom_call.1} parent=1 // pred_region
      %s14 = ssub.s32 128, 128
      %15 = vsyncadd [#allocation3], %s14
      %s17 = sshll.u32 [#allocation2], 4
      %s18 = int_to_ptr.vmem [resolvable:$true] %s17
      %20 = dma.hbm_to_vmem [thread:$0]  %s0, 128, %s18, [#allocation3]
    $region5: #{tpu_custom_call.1} parent=1 // pred_fallthru
      _
    // Predicated region
    $region6: #{tpu_custom_call.1} parent=1 // pred_check
      _
    $region7: #{tpu_custom_call.1} parent=1 // pred_check_branch
      %22 = sbr.rel (0) target = $region9
    $region8: #{tpu_custom_call.1} parent=1 // pred_region
      %s24 = ssub.s32 128, 128
      %25 = vsyncadd [#allocation6], %s24
      %s27 = sshll.u32 [#allocation5], 4
      %s28 = int_to_ptr.vmem [resolvable:$true] %s27
      %30 = dma.hbm_to_vmem [thread:$0]  %s1, 128, %s28, [#allocation6]
    $region9: #{tpu_custom_call.1} parent=1 // pred_fallthru
      _
    // Predicated region
    $region10: #{tpu_custom_call.1} parent=1 // pred_check
      _
    $region11: #{tpu_custom_call.1} parent=1 // pred_check_branch
      %32 = sbr.rel (0) target = $region13
    $region12: #{tpu_custom_call.1} parent=1 // pred_region
      _
    $region13: #{tpu_custom_call.1} parent=1 // pred_fallthru
      _
    // Predicated region
    $region14: #{tpu_custom_call.1} parent=1 // pred_check
      _
    $region15: #{tpu_custom_call.1} parent=1 // pred_check_branch
      %34 = sbr.rel (0) target = $region17
    $region16: #{tpu_custom_call.1} parent=1 // pred_region
      %35 = dma.done [#allocation3], 128
    $region17: #{tpu_custom_call.1} parent=1 // pred_fallthru
      _
    // Predicated region
    $region18: #{tpu_custom_call.1} parent=1 // pred_check
      _
    $region19: #{tpu_custom_call.1} parent=1 // pred_check_branch
      %37 = sbr.rel (0) target = $region21
    $region20: #{tpu_custom_call.1} parent=1 // pred_region
      %38 = dma.done [#allocation6], 128
    $region21: #{tpu_custom_call.1} parent=1 // pred_fallthru
      _
    %v39 = vld [vmem:[#allocation2] sm:$0xff]
    %v40 = vld [vmem:[#allocation5] sm:$0xff]
    %v41 = vld [vmem:[%s2] sm:$0x1]
    %42 = vmatprep.subr.mxu0 0.0
    %43 = vmatpush1.xpose.msra.mxu0 0.0
    %44 = vmatprep.subr.mxu0 0.0
    %45 = vmatpush1.xpose.msra.mxu0 0.0
    %46 = vmatprep.subr.mxu0 0.0
    %47 = vmatpush1.xpose.msra.mxu0 0.0
    %48 = vmatprep.subr.mxu0 0.0
    %49 = vmatpush1.xpose.msra.mxu0 0.0
    %50 = vmatprep.subr.mxu0 0.0
    %51 = vmatpush1.xpose.msra.mxu0 0.0
    %52 = vmatprep.subr.mxu0 0.0
    %53 = vmatpush1.xpose.msra.mxu0 0.0
    %54 = vmatprep.subr.mxu0 0.0
    %55 = vmatpush1.xpose.msra.mxu0 0.0
    %56 = vmatprep.subr.mxu0 0.0
    %57 = vmatpush1.xpose.msra.mxu0 0.0
    %58 = vmatprep.subr.mxu0 0.0
    %59 = vmatpush1.xpose.msra.mxu0 0.0
    %60 = vmatprep.subr.mxu0 0.0
    %61 = vmatpush1.xpose.msra.mxu0 0.0
    %62 = vmatprep.subr.mxu0 0.0
    %63 = vmatpush1.xpose.msra.mxu0 0.0
    %64 = vmatprep.subr.mxu0 0.0
    %65 = vmatpush1.xpose.msra.mxu0 0.0
    %66 = vmatprep.subr.mxu0 0.0
    %67 = vmatpush1.xpose.msra.mxu0 0.0
    %68 = vmatprep.subr.mxu0 0.0
    %69 = vmatpush1.xpose.msra.mxu0 0.0
    %70 = vmatprep.subr.mxu0 0.0
    %71 = vmatpush1.xpose.msra.mxu0 0.0
    %72 = vmatprep.subr.mxu0 0.0
    %73 = vmatpush1.xpose.msra.mxu0 %v40
    %74 = vmatprep.subr.mxu0 0.0
    %75 = vmatpush2.xpose.msra.mxu0 0.0
    %76 = vmatprep.subr.mxu0 0.0
    %77 = vmatpush2.xpose.msra.mxu0 0.0
    %78 = vmatprep.subr.mxu0 0.0
    %79 = vmatpush2.xpose.msra.mxu0 0.0
    %80 = vmatprep.subr.mxu0 0.0
    %81 = vmatpush2.xpose.msra.mxu0 0.0
    %82 = vmatprep.subr.mxu0 0.0
    %83 = vmatpush2.xpose.msra.mxu0 0.0
    %84 = vmatprep.subr.mxu0 0.0
    %85 = vmatpush2.xpose.msra.mxu0 0.0
    %86 = vmatprep.subr.mxu0 0.0
    %87 = vmatpush2.xpose.msra.mxu0 0.0
    %88 = vmatprep.subr.mxu0 0.0
    %89 = vmatpush2.xpose.msra.mxu0 0.0
    %90 = vmatprep.subr.mxu0 0.0
    %91 = vmatpush2.xpose.msra.mxu0 0.0
    %92 = vmatprep.subr.mxu0 0.0
    %93 = vmatpush2.xpose.msra.mxu0 0.0
    %94 = vmatprep.subr.mxu0 0.0
    %95 = vmatpush2.xpose.msra.mxu0 0.0
    %96 = vmatprep.subr.mxu0 0.0
    %97 = vmatpush2.xpose.msra.mxu0 0.0
    %98 = vmatprep.subr.mxu0 0.0
    %99 = vmatpush2.xpose.msra.mxu0 0.0
    %100 = vmatprep.subr.mxu0 0.0
    %101 = vmatpush2.xpose.msra.mxu0 0.0
    %102 = vmatprep.subr.mxu0 0.0
    %103 = vmatpush2.xpose.msra.mxu0 0.0
    %104 = vmatprep.subr.mxu0 0.0
    %105 = vmatpush2.xpose.msra.mxu0 0.0
    %106 = vmatprep.mubr.f32.mxu0 0.0
    %107 = vmatmul.mubr.f32.gmra.mxu0 %v39
    %v108 = vpop.f32.mrf.mxu0
    %v109 = vadd.f32 0.0, %v108
    %v110 = vpop.f32.mrf.mxu0
    %111 = vdwg.mxu0
    %v112 = vmul.f32 %v39, %v39
    %113 = vadd.xlane.f32.xlu0 %v112
    %v114 = vpop.xlane.xlu0 %113
    %v115 = vsub.f32 %v114, 1.0
    %v116 = vadd.f32 %v115, %v109
    %v117 = vmax.f32 %v116, 0.0
    %v118 = vrsqrt.pop %v117
    %v119 = vmul.f32 %v117, %v118
    %vm120 = vcmp.eq.f32.partialorder %v117, inf
    %v121 = vsel %vm120, %v117, %v119
    %vm122 = vcmp.eq.f32.partialorder %v117, 0.0
    %v123 = vand.u32 %v117, 2147483648
    %v124 = vsel %vm122, %v123, %v121
    %v125 = vadd.f32 %v124, 1.0
    %v126 = vrcp.pop %v125
    %v127 = vmul.f32 1.0, %v126
    %v129 = vlaneseq
    %v130 = vshrl.u32 %v129, 7
    %v131 = vsub.s32 0, %v130
    %v132 = vrot.slane %v41, %v131
    %v134 = vmul.f32 %v127, %v132
    %vm135 = vcmask 64512
    %v136 = vsel %vm135, %v134, 0.0
    %137 = vadd.xlane.f32.xlu0 %v136
    %v138 = vpop.xlane.xlu0 %137
    %v140 = vsel %vm135, %v134, 0
    %142 = vmatprep.subr.mxu0 0.0
    %143 = vmatpush1.msra.mxu0 0.0
    %144 = vmatprep.subr.mxu0 0.0
    %145 = vmatpush1.msra.mxu0 0.0
    %146 = vmatprep.subr.mxu0 0.0
    %147 = vmatpush1.msra.mxu0 0.0
    %148 = vmatprep.subr.mxu0 0.0
    %149 = vmatpush1.msra.mxu0 0.0
    %150 = vmatprep.subr.mxu0 0.0
    %151 = vmatpush1.msra.mxu0 0.0
    %152 = vmatprep.subr.mxu0 0.0
    %153 = vmatpush1.msra.mxu0 0.0
    %154 = vmatprep.subr.mxu0 0.0
    %155 = vmatpush1.msra.mxu0 0.0
    %156 = vmatprep.subr.mxu0 0.0
    %157 = vmatpush1.msra.mxu0 0.0
    %158 = vmatprep.subr.mxu0 0.0
    %159 = vmatpush1.msra.mxu0 0.0
    %160 = vmatprep.subr.mxu0 0.0
    %161 = vmatpush1.msra.mxu0 0.0
    %162 = vmatprep.subr.mxu0 0.0
    %163 = vmatpush1.msra.mxu0 0.0
    %164 = vmatprep.subr.mxu0 0.0
    %165 = vmatpush1.msra.mxu0 0.0
    %166 = vmatprep.subr.mxu0 0.0
    %167 = vmatpush1.msra.mxu0 0.0
    %168 = vmatprep.subr.mxu0 0.0
    %169 = vmatpush1.msra.mxu0 0.0
    %170 = vmatprep.subr.mxu0 0.0
    %171 = vmatpush1.msra.mxu0 0.0
    %172 = vmatprep.subr.mxu0 0.0
    %173 = vmatpush1.msra.mxu0 %v40
    %174 = vmatprep.subr.mxu0 0.0
    %175 = vmatpush2.msra.mxu0 0.0
    %176 = vmatprep.subr.mxu0 0.0
    %177 = vmatpush2.msra.mxu0 0.0
    %178 = vmatprep.subr.mxu0 0.0
    %179 = vmatpush2.msra.mxu0 0.0
    %180 = vmatprep.subr.mxu0 0.0
    %181 = vmatpush2.msra.mxu0 0.0
    %182 = vmatprep.subr.mxu0 0.0
    %183 = vmatpush2.msra.mxu0 0.0
    %184 = vmatprep.subr.mxu0 0.0
    %185 = vmatpush2.msra.mxu0 0.0
    %186 = vmatprep.subr.mxu0 0.0
    %187 = vmatpush2.msra.mxu0 0.0
    %188 = vmatprep.subr.mxu0 0.0
    %189 = vmatpush2.msra.mxu0 0.0
    %190 = vmatprep.subr.mxu0 0.0
    %191 = vmatpush2.msra.mxu0 0.0
    %192 = vmatprep.subr.mxu0 0.0
    %193 = vmatpush2.msra.mxu0 0.0
    %194 = vmatprep.subr.mxu0 0.0
    %195 = vmatpush2.msra.mxu0 0.0
    %196 = vmatprep.subr.mxu0 0.0
    %197 = vmatpush2.msra.mxu0 0.0
    %198 = vmatprep.subr.mxu0 0.0
    %199 = vmatpush2.msra.mxu0 0.0
    %200 = vmatprep.subr.mxu0 0.0
    %201 = vmatpush2.msra.mxu0 0.0
    %202 = vmatprep.subr.mxu0 0.0
    %203 = vmatpush2.msra.mxu0 0.0
    %204 = vmatprep.subr.mxu0 0.0
    %205 = vmatpush2.msra.mxu0 0.0
    %206 = vmatprep.mubr.f32.mxu0 0.0
    %207 = vmatmul.mubr.f32.gmra.mxu0 %v140
    %v208 = vpop.f32.mrf.mxu0
    %v209 = vadd.f32 0.0, %v208
    %v210 = vpop.f32.mrf.mxu0
    %211 = vdwg.mxu0
    %v212 = vrcp.pop %v138
    %v213 = vmul.f32 %v212, -0.5
    %v214 = vmul.f32 %v209, %v213
    %215 = vst [vmem:[#allocation7] sm:$0xff] %v214
    // Predicated region
    $region22: #{tpu_custom_call.1} parent=1 // pred_check
      _
    $region23: #{tpu_custom_call.1} parent=1 // pred_check_branch
      %217 = sbr.rel (0) target = $region25
    $region24: #{tpu_custom_call.1} parent=1 // pred_region
      %s219 = ssub.s32 128, 128
      %220 = vsyncadd [#allocation4], %s219
      %s222 = sshll.u32 [#allocation7], 4
      %s223 = int_to_ptr.vmem [resolvable:$true] %s222
      %225 = dma.vmem_to_hbm [thread:$0]  %s223, 128, %s3, [#allocation4]
    $region25: #{tpu_custom_call.1} parent=1 // pred_fallthru
      _
    // Predicated region
    $region26: #{tpu_custom_call.1} parent=1 // pred_check
      _
    $region27: #{tpu_custom_call.1} parent=1 // pred_check_branch
      %227 = sbr.rel (0) target = $region29
    $region28: #{tpu_custom_call.1} parent=1 // pred_region
      %228 = dma.done [#allocation4], 128
    $region29: #{tpu_custom_call.1} parent=1 // pred_fallthru
      _
    %229 = vsyncpa [#allocation3], 1
    %230 = vsyncpa [#allocation6], 1
    %231 = vsyncpa [#allocation4], 1

// kernel: tpu_custom_call.1
$region0: #{tpu_custom_call.1}
  #allocation0 [shape = 'u32[]', space=smem, size = 0x4, offset = 0x4, fixed_abs, tag = 'smem constant byte address 0x4 - core index']
  #allocation1 [shape = 'u32[144,128]{1,0:T(1,128)}', space=vmem, size = 0x12000, scoped, tag = 'internal scratch']
  %s0 = inlined_call_operand.hbm [shape: f32[8,128], index: 0, kind: input, shape index: {}]
  %s1 = inlined_call_operand.hbm [shape: f32[8,128], index: 1, kind: input, shape index: {}]
  %s2 = inlined_call_operand.vmem [shape: f32[1,8], index: 2, kind: input, shape index: {}]
  %s3 = inlined_call_operand.hbm [shape: f32[8,128], index: 3, kind: output, shape index: {}]
  %s4 = sld [smem:[#allocation0]]
  $region30: #{tpu_custom_call.1} parent=0
    _
  %s6 = ssub.s32 1, %s4
  %s7 = scalar_select 0, %s6, %s4
  $region1: #{tpu_custom_call.1} parent=0
    #allocation2 [shape = 'u8[4096]{0}', space=vmem, size = 0x1000, scoped, tag = 'input window, operand 0, single buffered']
    #allocation3 [shape = 's32[1]{0}', space=sflag, size = 0x4, scoped, tag = 'scoped memory for tpu_custom_call.1']
    #allocation4 [shape = 's32[1]{0}', space=sflag, size = 0x4, scoped, tag = 'scoped memory for tpu_custom_call.1']
    #allocation5 [shape = 'u8[4096]{0}', space=vmem, size = 0x1000, scoped, tag = 'input window, operand 1, single buffered']
    #allocation6 [shape = 's32[1]{0}', space=sflag, size = 0x4, scoped, tag = 'scoped memory for tpu_custom_call.1']
    #allocation7 [shape = 'u8[4096]{0}', space=vmem, size = 0x1000, scoped, tag = 'output window, operand 0, single buffered']
    %8 = vsyncpa [#allocation3], 0
    %9 = vsyncpa [#allocation6], 0
    %10 = vsyncpa [#allocation4], 0
    // Predicated region
    $region2: #{tpu_custom_call.1} parent=1 // pred_check
      _
    $region3: #{tpu_custom_call.1} parent=1 // pred_check_branch
      %12 = sbr.rel (0) target = $region5
    $region4: #{tpu_custom_call.1} parent=1 // pred_region
      %s14 = ssub.s32 128, 128
      %15 = vsyncadd [#allocation3], %s14
      %s17 = sshll.u32 [#allocation2], 4
      %s18 = int_to_ptr.vmem [resolvable:$true] %s17
      %20 = dma.hbm_to_vmem [thread:$0]  %s0, 128, %s18, [#allocation3]
    $region5: #{tpu_custom_call.1} parent=1 // pred_fallthru
      _
    // Predicated region
    $region6: #{tpu_custom_call.1} parent=1 // pred_check
      _
    $region7: #{tpu_custom_call.1} parent=1 // pred_check_branch
      %22 = sbr.rel (0) target = $region9
    $region8: #{tpu_custom_call.1} parent=1 // pred_region
      %s24 = ssub.s32 128, 128
      %25 = vsyncadd [#allocation6], %s24
      %s27 = sshll.u32 [#allocation5], 4
      %s28 = int_to_ptr.vmem [resolvable:$true] %s27
      %30 = dma.hbm_to_vmem [thread:$0]  %s1, 128, %s28, [#allocation6]
    $region9: #{tpu_custom_call.1} parent=1 // pred_fallthru
      _
    // Predicated region
    $region10: #{tpu_custom_call.1} parent=1 // pred_check
      _
    $region11: #{tpu_custom_call.1} parent=1 // pred_check_branch
      %32 = sbr.rel (0) target = $region13
    $region12: #{tpu_custom_call.1} parent=1 // pred_region
      _
    $region13: #{tpu_custom_call.1} parent=1 // pred_fallthru
      _
    // Predicated region
    $region14: #{tpu_custom_call.1} parent=1 // pred_check
      _
    $region15: #{tpu_custom_call.1} parent=1 // pred_check_branch
      %34 = sbr.rel (0) target = $region17
    $region16: #{tpu_custom_call.1} parent=1 // pred_region
      %35 = dma.done [#allocation3], 128
    $region17: #{tpu_custom_call.1} parent=1 // pred_fallthru
      _
    // Predicated region
    $region18: #{tpu_custom_call.1} parent=1 // pred_check
      _
    $region19: #{tpu_custom_call.1} parent=1 // pred_check_branch
      %37 = sbr.rel (0) target = $region21
    $region20: #{tpu_custom_call.1} parent=1 // pred_region
      %38 = dma.done [#allocation6], 128
    $region21: #{tpu_custom_call.1} parent=1 // pred_fallthru
      _
    %v39 = vld [vmem:[#allocation2] sm:$0xff]
    %v40 = vld [vmem:[#allocation5] sm:$0xff]
    %v41 = vld [vmem:[%s2] sm:$0x1]
    %42 = vmatprep.subr.mxu0 0.0
    %43 = vmatpush1.xpose.msra.mxu0 0.0
    %44 = vmatprep.subr.mxu0 0.0
    %45 = vmatpush1.xpose.msra.mxu0 0.0
    %46 = vmatprep.subr.mxu0 0.0
    %47 = vmatpush1.xpose.msra.mxu0 0.0
    %48 = vmatprep.subr.mxu0 0.0
    %49 = vmatpush1.xpose.msra.mxu0 0.0
    %50 = vmatprep.subr.mxu0 0.0
    %51 = vmatpush1.xpose.msra.mxu0 0.0
    %52 = vmatprep.subr.mxu0 0.0
    %53 = vmatpush1.xpose.msra.mxu0 0.0
    %54 = vmatprep.subr.mxu0 0.0
    %55 = vmatpush1.xpose.msra.mxu0 0.0
    %56 = vmatprep.subr.mxu0 0.0
    %57 = vmatpush1.xpose.msra.mxu0 0.0
    %58 = vmatprep.subr.mxu0 0.0
    %59 = vmatpush1.xpose.msra.mxu0 0.0
    %60 = vmatprep.subr.mxu0 0.0
    %61 = vmatpush1.xpose.msra.mxu0 0.0
    %62 = vmatprep.subr.mxu0 0.0
    %63 = vmatpush1.xpose.msra.mxu0 0.0
    %64 = vmatprep.subr.mxu0 0.0
    %65 = vmatpush1.xpose.msra.mxu0 0.0
    %66 = vmatprep.subr.mxu0 0.0
    %67 = vmatpush1.xpose.msra.mxu0 0.0
    %68 = vmatprep.subr.mxu0 0.0
    %69 = vmatpush1.xpose.msra.mxu0 0.0
    %70 = vmatprep.subr.mxu0 0.0
    %71 = vmatpush1.xpose.msra.mxu0 0.0
    %72 = vmatprep.subr.mxu0 0.0
    %73 = vmatpush1.xpose.msra.mxu0 %v40
    %74 = vmatprep.subr.mxu0 0.0
    %75 = vmatpush2.xpose.msra.mxu0 0.0
    %76 = vmatprep.subr.mxu0 0.0
    %77 = vmatpush2.xpose.msra.mxu0 0.0
    %78 = vmatprep.subr.mxu0 0.0
    %79 = vmatpush2.xpose.msra.mxu0 0.0
    %80 = vmatprep.subr.mxu0 0.0
    %81 = vmatpush2.xpose.msra.mxu0 0.0
    %82 = vmatprep.subr.mxu0 0.0
    %83 = vmatpush2.xpose.msra.mxu0 0.0
    %84 = vmatprep.subr.mxu0 0.0
    %85 = vmatpush2.xpose.msra.mxu0 0.0
    %86 = vmatprep.subr.mxu0 0.0
    %87 = vmatpush2.xpose.msra.mxu0 0.0
    %88 = vmatprep.subr.mxu0 0.0
    %89 = vmatpush2.xpose.msra.mxu0 0.0
    %90 = vmatprep.subr.mxu0 0.0
    %91 = vmatpush2.xpose.msra.mxu0 0.0
    %92 = vmatprep.subr.mxu0 0.0
    %93 = vmatpush2.xpose.msra.mxu0 0.0
    %94 = vmatprep.subr.mxu0 0.0
    %95 = vmatpush2.xpose.msra.mxu0 0.0
    %96 = vmatprep.subr.mxu0 0.0
    %97 = vmatpush2.xpose.msra.mxu0 0.0
    %98 = vmatprep.subr.mxu0 0.0
    %99 = vmatpush2.xpose.msra.mxu0 0.0
    %100 = vmatprep.subr.mxu0 0.0
    %101 = vmatpush2.xpose.msra.mxu0 0.0
    %102 = vmatprep.subr.mxu0 0.0
    %103 = vmatpush2.xpose.msra.mxu0 0.0
    %104 = vmatprep.subr.mxu0 0.0
    %105 = vmatpush2.xpose.msra.mxu0 0.0
    %106 = vmatprep.mubr.f32.mxu0 0.0
    %107 = vmatmul.mubr.f32.gmra.mxu0 %v39
    %v108 = vpop.f32.mrf.mxu0
    %v109 = vadd.f32 0.0, %v108
    %v110 = vpop.f32.mrf.mxu0
    %111 = vdwg.mxu0
    %v112 = vmul.f32 %v39, %v39
    %113 = vadd.xlane.f32.xlu0 %v112
    %v114 = vpop.xlane.xlu0 %113
    %v115 = vsub.f32 %v114, 1.0
    %v116 = vadd.f32 %v115, %v109
    %v117 = vmax.f32 %v116, 0.0
    %v118 = vrsqrt.pop %v117
    %v119 = vmul.f32 %v117, %v118
    %vm120 = vcmp.eq.f32.partialorder %v117, inf
    %v121 = vsel %vm120, %v117, %v119
    %vm122 = vcmp.eq.f32.partialorder %v117, 0.0
    %v123 = vand.u32 %v117, 2147483648
    %v124 = vsel %vm122, %v123, %v121
    %v125 = vadd.f32 %v124, 1.0
    %v126 = vrcp.pop %v125
    %v127 = vmul.f32 1.0, %v126
    %v129 = vlaneseq
    %v130 = vshrl.u32 %v129, 7
    %v131 = vsub.s32 0, %v130
    %v132 = vrot.slane %v41, %v131
    %v134 = vmul.f32 %v127, %v132
    %vm135 = vcmask 64512
    %v136 = vsel %vm135, %v134, 0.0
    %137 = vadd.xlane.f32.xlu0 %v136
    %v138 = vpop.xlane.xlu0 %137
    %v140 = vsel %vm135, %v134, 0
    %142 = vmatprep.subr.mxu0 0.0
    %143 = vmatpush1.msra.mxu0 0.0
    %144 = vmatprep.subr.mxu0 0.0
    %145 = vmatpush1.msra.mxu0 0.0
    %146 = vmatprep.subr.mxu0 0.0
    %147 = vmatpush1.msra.mxu0 0.0
    %148 = vmatprep.subr.mxu0 0.0
    %149 = vmatpush1.msra.mxu0 0.0
    %150 = vmatprep.subr.mxu0 0.0
    %151 = vmatpush1.msra.mxu0 0.0
    %152 = vmatprep.subr.mxu0 0.0
    %153 = vmatpush1.msra.mxu0 0.0
    %154 = vmatprep.subr.mxu0 0.0
    %155 = vmatpush1.msra.mxu0 0.0
    %156 = vmatprep.subr.mxu0 0.0
    %157 = vmatpush1.msra.mxu0 0.0
    %158 = vmatprep.subr.mxu0 0.0
    %159 = vmatpush1.msra.mxu0 0.0
    %160 = vmatprep.subr.mxu0 0.0
    %161 = vmatpush1.msra.mxu0 0.0
    %162 = vmatprep.subr.mxu0 0.0
    %163 = vmatpush1.msra.mxu0 0.0
    %164 = vmatprep.subr.mxu0 0.0
    %165 = vmatpush1.msra.mxu0 0.0
    %166 = vmatprep.subr.mxu0 0.0
    %167 = vmatpush1.msra.mxu0 0.0
    %168 = vmatprep.subr.mxu0 0.0
    %169 = vmatpush1.msra.mxu0 0.0
    %170 = vmatprep.subr.mxu0 0.0
    %171 = vmatpush1.msra.mxu0 0.0
    %172 = vmatprep.subr.mxu0 0.0
    %173 = vmatpush1.msra.mxu0 %v40
    %174 = vmatprep.subr.mxu0 0.0
    %175 = vmatpush2.msra.mxu0 0.0
    %176 = vmatprep.subr.mxu0 0.0
    %177 = vmatpush2.msra.mxu0 0.0
    %178 = vmatprep.subr.mxu0 0.0
    %179 = vmatpush2.msra.mxu0 0.0
    %180 = vmatprep.subr.mxu0 0.0
    %181 = vmatpush2.msra.mxu0 0.0
    %182 = vmatprep.subr.mxu0 0.0
    %183 = vmatpush2.msra.mxu0 0.0
    %184 = vmatprep.subr.mxu0 0.0
    %185 = vmatpush2.msra.mxu0 0.0
    %186 = vmatprep.subr.mxu0 0.0
    %187 = vmatpush2.msra.mxu0 0.0
    %188 = vmatprep.subr.mxu0 0.0
    %189 = vmatpush2.msra.mxu0 0.0
    %190 = vmatprep.subr.mxu0 0.0
    %191 = vmatpush2.msra.mxu0 0.0
    %192 = vmatprep.subr.mxu0 0.0
    %193 = vmatpush2.msra.mxu0 0.0
    %194 = vmatprep.subr.mxu0 0.0
    %195 = vmatpush2.msra.mxu0 0.0
    %196 = vmatprep.subr.mxu0 0.0
    %197 = vmatpush2.msra.mxu0 0.0
    %198 = vmatprep.subr.mxu0 0.0
    %199 = vmatpush2.msra.mxu0 0.0
    %200 = vmatprep.subr.mxu0 0.0
    %201 = vmatpush2.msra.mxu0 0.0
    %202 = vmatprep.subr.mxu0 0.0
    %203 = vmatpush2.msra.mxu0 0.0
    %204 = vmatprep.subr.mxu0 0.0
    %205 = vmatpush2.msra.mxu0 0.0
    %206 = vmatprep.mubr.f32.mxu0 0.0
    %207 = vmatmul.mubr.f32.gmra.mxu0 %v140
    %v208 = vpop.f32.mrf.mxu0
    %v209 = vadd.f32 0.0, %v208
    %v210 = vpop.f32.mrf.mxu0
    %211 = vdwg.mxu0
    %v212 = vrcp.pop %v138
    %v213 = vmul.f32 %v212, -0.5
    %v214 = vmul.f32 %v209, %v213
    %215 = vst [vmem:[#allocation7] sm:$0xff] %v214
    // Predicated region
    $region22: #{tpu_custom_call.1} parent=1 // pred_check
      _
    $region23: #{tpu_custom_call.1} parent=1 // pred_check_branch
      %217 = sbr.rel (0) target = $region25
    $region24: #{tpu_custom_call.1} parent=1 // pred_region
      %s219 = ssub.s32 128, 128
      %220 = vsyncadd [#allocation4], %s219
      %s222 = sshll.u32 [#allocation7], 4
      %s223 = int_to_ptr.vmem [resolvable:$true] %s222
      %225 = dma.vmem_to_hbm [thread:$0]  %s223, 128, %s3, [#allocation4]
    $region25: #{tpu_custom_call.1} parent=1 // pred_fallthru
      _
    // Predicated region
    $region26: #{tpu_custom_call.1} parent=1 // pred_check
      _
    $region27: #{tpu_custom_call.1} parent=1 // pred_check_branch
      %227 = sbr.rel (0) target = $region29
    $region28: #{tpu_custom_call.1} parent=1 // pred_region
      %228 = dma.done [#allocation4], 128
    $region29: #{tpu_custom_call.1} parent=1 // pred_fallthru
      _
    %229 = vsyncpa [#allocation3], 1
    %230 = vsyncpa [#allocation6], 1
    %231 = vsyncpa [#allocation4], 1

</llo_original>
